<compile_context>
chip_gen: v7x
topology: tpu7x:2x2x1
jax: 0.10.0
libtpu: 0.0.40
codegen_flags: <defaults>
</compile_context>

<pallas_src>
import functools

import jax
import jax.numpy as jnp
from jax.experimental import pallas as pl
from jax.experimental.pallas import tpu as pltpu


def _round_up(x, m):
    return ((x + m - 1) // m) * m


def _cdiv(a, b):
    return -(-a // b)


def _vmem_budget_bytes():
    """Per-generation VMEM budget (~60% of capacity, capped)."""
    cap = 64 * 1024 * 1024  # conservative fallback = v7x per-TC VMEM
    try:
        cap = int(pltpu.get_tpu_info().vmem_capacity_bytes)
    except Exception:
        pass
    return int(min(0.6 * cap, 96 * 1024 * 1024))


def _choose_tm(n_rows_aligned, tm_max):
    """Row tile: multiple of 16 (bf16 sublane packing). Prefer an even tile
    count >= 2 so the 'parallel' row axis shards evenly across v7x's two
    TensorCores (no-op on single-TC v5e/v6e)."""
    tm = _round_up(min(tm_max, n_rows_aligned), 16)
    tiles = _cdiv(n_rows_aligned, tm)
    if tiles % 2 == 1 and n_rows_aligned >= 32:
        tm2 = _round_up(_cdiv(n_rows_aligned, tiles + 1), 16)
        if tm2 >= 16:
            tm = tm2
    return tm


def _gcn_kernel_fused(adj_ref, x_ref, w_ref, b_ref, o_ref, acc_ref, *,
                      tk, x_resident):
    """acc += A_tile @ X_tile ; epilogue: ReLU(acc @ W + b)."""
    k = pl.program_id(1)

    @pl.when(k == 0)
    def _init():
        acc_ref[...] = jnp.zeros_like(acc_ref)

    if x_resident:
        # X is VMEM-resident (DMA'd once); slice the current K window.
        start = pl.multiple_of(k * tk, 128)
        x_blk = x_ref[pl.ds(start, tk), :]
    else:
        x_blk = x_ref[...]
    acc_ref[...] += jnp.dot(adj_ref[...], x_blk,
                            preferred_element_type=jnp.float32)

    @pl.when(k == pl.num_programs(1) - 1)
    def _epilogue():
        # Node apply once per row tile: bf16 x bf16 MXU, f32 accumulation.
        h = jnp.dot(acc_ref[...].astype(jnp.bfloat16), w_ref[...],
                    preferred_element_type=jnp.float32)
        h = h + b_ref[...]                    # (1, F_out_pad) broadcast
        o_ref[...] = jnp.maximum(h, 0.0).astype(o_ref.dtype)


def _gcn_kernel_preproj(adj_ref, xw_ref, b_ref, o_ref, acc_ref, *,
                        tk, x_resident):
    """Stream matrix is XW (projection done once in the wrapper);
    epilogue is just bias + ReLU."""
    k = pl.program_id(1)

    @pl.when(k == 0)
    def _init():
        acc_ref[...] = jnp.zeros_like(acc_ref)

    if x_resident:
        start = pl.multiple_of(k * tk, 128)
        xw_blk = xw_ref[pl.ds(start, tk), :]
    else:
        xw_blk = xw_ref[...]
    acc_ref[...] += jnp.dot(adj_ref[...], xw_blk,
                            preferred_element_type=jnp.float32)

    @pl.when(k == pl.num_programs(1) - 1)
    def _epilogue():
        h = acc_ref[...] + b_ref[...]
        o_ref[...] = jnp.maximum(h, 0.0).astype(o_ref.dtype)


def gcn_forward(adj, x, w_t, b, *, tm=512, tk=1024,
                project_first=None, x_resident=None):
    """adj: (N, N), x: (N, F_in), w_t: (F_in, F_out), b: (F_out,) -> (N, F_out)."""
    n, f_in = x.shape
    f_out = w_t.shape[1]
    f_in_p = _round_up(f_in, 128)
    f_out_p = _round_up(f_out, 128)

    if project_first is None:
        # Wide-in / narrow-out: project X@W once so the dominant N^2 stream
        # (and the accumulator) run at the narrower F_out width.
        project_first = f_out_p < f_in_p
    f_stream = f_out_p if project_first else f_in_p

    # ---- tiling ------------------------------------------------------------
    n_rows_aligned = _round_up(n, 16)
    tm = _choose_tm(n_rows_aligned, tm)
    n_rows = _round_up(n, tm)
    tk = _round_up(min(tk, _round_up(n, 128)), 128)
    n_cols = _round_up(n, tk)
    grid = (n_rows // tm, n_cols // tk)
    num_row_tiles = grid[0]

    # ---- VMEM budget / X residency decision ---------------------------------
    vmem_limit = _vmem_budget_bytes()
    tile_bytes = (2 * tm * tk * 2            # A double buffer (bf16)
                  + 2 * tm * f_out_p * 4     # output double buffer (f32)
                  + tm * f_stream * 4)       # f32 accumulator scratch
    if not project_first:
        tile_bytes += 2 * f_in_p * f_out_p * 2   # resident W (bf16)
    resident_s_bytes = 2 * n_cols * f_stream * 2
    if x_resident is None:
        x_resident = tile_bytes + resident_s_bytes <= int(0.8 * vmem_limit)

    # ---- pad & cast (A is 0/1 so bf16 is exact; accumulation stays f32) -----
    adj_p = jnp.zeros((n_rows, n_cols), jnp.bfloat16).at[:n, :n].set(
        adj.astype(jnp.bfloat16))
    b_p = jnp.zeros((1, f_out_p), jnp.float32).at[0, :f_out].set(
        b.astype(jnp.float32))

    if project_first:
        xw = jnp.dot(x.astype(jnp.float32), w_t.astype(jnp.float32),
                     precision=jax.lax.Precision.HIGHEST)
        s_p = jnp.zeros((n_cols, f_stream), jnp.bfloat16).at[:n, :f_out].set(
            xw.astype(jnp.bfloat16))
    else:
        s_p = jnp.zeros((n_cols, f_stream), jnp.bfloat16).at[:n, :f_in].set(
            x.astype(jnp.bfloat16))
        w_p = jnp.zeros((f_in_p, f_out_p), jnp.bfloat16).at[:f_in, :f_out].set(
            w_t.astype(jnp.bfloat16))

    adj_spec = pl.BlockSpec((tm, tk), lambda i, k: (i, k))
    if x_resident:
        s_spec = pl.BlockSpec((n_cols, f_stream), lambda i, k: (0, 0))
    else:
        s_spec = pl.BlockSpec((tk, f_stream), lambda i, k: (k, 0))
    b_spec = pl.BlockSpec((1, f_out_p), lambda i, k: (0, 0))
    out_spec = pl.BlockSpec((tm, f_out_p), lambda i, k: (i, 0))

    # ---- cost estimate (X bytes scaled by re-stream factor if not resident) -
    flops = 2 * n_rows * n_cols * f_stream
    if not project_first:
        flops += 2 * n_rows * f_in_p * f_out_p
    s_hbm = n_cols * f_stream * 2 * (1 if x_resident else num_row_tiles)
    bytes_accessed = (adj_p.size * 2 + s_hbm + b_p.size * 4
                      + n_rows * f_out_p * 4)
    if not project_first:
        bytes_accessed += f_in_p * f_out_p * 2

    if project_first:
        kernel = functools.partial(_gcn_kernel_preproj, tk=tk,
                                   x_resident=x_resident)
        in_specs = [adj_spec, s_spec, b_spec]
        args = (adj_p, s_p, b_p)
    else:
        kernel = functools.partial(_gcn_kernel_fused, tk=tk,
                                   x_resident=x_resident)
        w_spec = pl.BlockSpec((f_in_p, f_out_p), lambda i, k: (0, 0))
        in_specs = [adj_spec, s_spec, w_spec, b_spec]
        args = (adj_p, s_p, w_p, b_p)

    out = pl.pallas_call(
        kernel,
        out_shape=jax.ShapeDtypeStruct((n_rows, f_out_p), jnp.float32),
        grid=grid,
        in_specs=in_specs,
        out_specs=out_spec,
        scratch_shapes=[pltpu.VMEM((tm, f_stream), jnp.float32)],
        compiler_params=pltpu.CompilerParams(
            dimension_semantics=("parallel", "arbitrary"),
            vmem_limit_bytes=vmem_limit,
        ),
        cost_estimate=pl.CostEstimate(
            flops=flops, transcendentals=0, bytes_accessed=bytes_accessed),
    )(*args)

    return out[:n, :f_out]


def gcn_reference(adj, x, w_t, b, project_first=None):
    """Pure-JAX reference with the same (deliberate) bf16 rounding as the kernel."""
    f_in_p = _round_up(x.shape[1], 128)
    f_out_p = _round_up(w_t.shape[1], 128)
    if project_first is None:
        project_first = f_out_p < f_in_p
    hi = jax.lax.Precision.HIGHEST
    a = adj.astype(jnp.bfloat16).astype(jnp.float32)
    if project_first:
        xw = jnp.dot(x.astype(jnp.float32), w_t.astype(jnp.float32),
                     precision=hi).astype(jnp.bfloat16).astype(jnp.float32)
        h = jnp.dot(a, xw, precision=hi) + b[None, :]
    else:
        xx = x.astype(jnp.bfloat16).astype(jnp.float32)
        agg = jnp.dot(a, xx, precision=hi)
        agg = agg.astype(jnp.bfloat16).astype(jnp.float32)
        ww = w_t.astype(jnp.bfloat16).astype(jnp.float32)
        h = jnp.dot(agg, ww, precision=hi) + b[None, :]
    return jnp.maximum(h, 0.0)


if __name__ == "__main__":
    def make_case(key, n, in_feats, out_feats, density=0.3):
        k_adj, k_x, k_w, k_b = jax.random.split(key, 4)
        adj = (jax.random.uniform(k_adj, (n, n)) < density).astype(jnp.float32)
        x = jax.random.normal(k_x, (n, in_feats), dtype=jnp.float32)
        bound = 1.0 / (in_feats ** 0.5)   # PyTorch nn.Linear default init bound
        w = jax.random.uniform(k_w, (out_feats, in_feats),
                               minval=-bound, maxval=bound)
        b = jax.random.uniform(k_b, (out_feats,), minval=-bound, maxval=bound)
        return adj, x, w.T, b             # weight pre-transposed to (F_in, F_out)

    k1, k2, k3 = jax.random.split(jax.random.PRNGKey(0), 3)
    ATOL, RTOL = 5e-2, 1e-2

    # Case 1: the module's toy size (single-tile grid, fused path).
    adj, x, w_t, b = make_case(k1, 16, 8, 32)
    out = jax.block_until_ready(gcn_forward(adj, x, w_t, b))
    ref = gcn_reference(adj, x, w_t, b)
    assert out.shape == (16, 32)
    assert jnp.allclose(out, ref, atol=ATOL, rtol=RTOL), "mismatch (case 1)"

    # Case 2: default big tiles, VMEM-resident X, fused path, padded dims,
    # even row-tile split for the 'parallel' axis.
    adj2, x2, w_t2, b2 = make_case(k2, 320, 24, 40)
    out2 = jax.block_until_ready(gcn_forward(adj2, x2, w_t2, b2))
    ref2 = gcn_reference(adj2, x2, w_t2, b2)
    assert out2.shape == (320, 40)
    assert jnp.allclose(out2, ref2, atol=ATOL, rtol=RTOL), "mismatch (case 2)"

    # Case 3: wide-in / narrow-out -> project-first path (A @ (X@W) streamed).
    adj3, x3, w_t3, b3 = make_case(k3, 200, 300, 64)
    out3 = jax.block_until_ready(gcn_forward(adj3, x3, w_t3, b3))
    ref3 = gcn_reference(adj3, x3, w_t3, b3)
    assert out3.shape == (200, 64)
    assert jnp.allclose(out3, ref3, atol=ATOL, rtol=RTOL), "mismatch (case 3)"

    # Case 3b: same data, fused path forced (non-square padded W in-kernel).
    out3b = jax.block_until_ready(
        gcn_forward(adj3, x3, w_t3, b3, project_first=False))
    ref3b = gcn_reference(adj3, x3, w_t3, b3, project_first=False)
    assert jnp.allclose(out3b, ref3b, atol=ATOL, rtol=RTOL), "mismatch (case 3b)"

    # Case 4: streamed-X fallback + multi-tile K reduction (exercises acc init
    # under pl.when, epilogue gating, and the per-K X BlockSpec path).
    out4 = jax.block_until_ready(
        gcn_forward(adj2, x2, w_t2, b2, tm=128, tk=128, x_resident=False))
    assert jnp.allclose(out4, ref2, atol=ATOL, rtol=RTOL), "mismatch (case 4)"

    print("KERNEL_OK")
</pallas_src>

<mosaic_0001>
module attributes {stable_mosaic.version = 11 : i64} {
  func.func @_gcn_kernel_fused(%arg0: i32, %arg1: i32, %arg2: memref<16x128xbf16, #tpu.memory_space<vmem>>, %arg3: memref<128x128xbf16, #tpu.memory_space<vmem>>, %arg4: memref<128x128xbf16, #tpu.memory_space<vmem>>, %arg5: memref<1x128xf32, #tpu.memory_space<vmem>>, %arg6: memref<16x128xf32, #tpu.memory_space<vmem>>, %arg7: memref<16x128xf32, #tpu.memory_space<vmem>>) attributes {dimension_semantics = [#tpu.dimension_semantics<parallel>, #tpu.dimension_semantics<arbitrary>], iteration_bounds = array<i64: 1, 1>, scalar_prefetch = 0 : i64, scratch_operands = 1 : i64, tpu.core_type = #tpu.core_type<tc>, window_params = [{transform_indices = @transform_0, window_bounds = array<i64: 16, 128>}, {pipeline_mode = #tpu.pipeline_mode<synchronous>, transform_indices = @transform_1, window_bounds = array<i64: 128, 128>}, {pipeline_mode = #tpu.pipeline_mode<synchronous>, transform_indices = @transform_2, window_bounds = array<i64: 128, 128>}, {pipeline_mode = #tpu.pipeline_mode<synchronous>, transform_indices = @transform_3, window_bounds = array<i64: 1, 128>}, {transform_indices = @transform_4, window_bounds = array<i64: 16, 128>}]} {
    %c0_i32 = arith.constant 0 : i32
    %0 = arith.cmpi eq, %arg1, %c0_i32 : i32
    %1 = arith.extui %0 : i1 to i32
    %c0_i32_0 = arith.constant 0 : i32
    %2 = arith.cmpi ne, %1, %c0_i32_0 : i32
    scf.if %2 {
      %cst_9 = arith.constant 0.000000e+00 : f32
      %15 = vector.broadcast %cst_9 : f32 to vector<16x128xf32>
      %c0_10 = arith.constant 0 : index
      %c0_11 = arith.constant 0 : index
      %16 = vector.load %arg7[%c0_10, %c0_11] : memref<16x128xf32, #tpu.memory_space<vmem>>, vector<16x128xf32>
      tpu.vector_store %arg7[%c0_10, %c0_11], %15 {strides = array<i32>} : memref<16x128xf32, #tpu.memory_space<vmem>>, vector<16x128xf32>,
    } else {
    }
    %c128_i32 = arith.constant 128 : i32
    %3 = arith.muli %arg1, %c128_i32 : i32
    %4 = tpu.assume_multiple %3, 128 : i32
    %5 = arith.index_cast %4 : i32 to index
    %c0 = arith.constant 0 : index
    %6 = vector.load %arg3[%5, %c0] : memref<128x128xbf16, #tpu.memory_space<vmem>>, vector<128x128xbf16>
    %c0_1 = arith.constant 0 : index
    %c0_2 = arith.constant 0 : index
    %7 = vector.load %arg7[%c0_1, %c0_2] : memref<16x128xf32, #tpu.memory_space<vmem>>, vector<16x128xf32>
    %c0_3 = arith.constant 0 : index
    %c0_4 = arith.constant 0 : index
    %8 = vector.load %arg2[%c0_3, %c0_4] : memref<16x128xbf16, #tpu.memory_space<vmem>>, vector<16x128xbf16>
    %cst = arith.constant dense<0.000000e+00> : vector<16x128xf32>
    %9 = tpu.matmul %8, %6, %cst {dimension_numbers = #tpu.dot_dimension_numbers<[1], [0], [0], [1], [0, 0, 1, 1], [], []>} : vector<16x128xbf16>, vector<128x128xbf16>, vector<16x128xf32> -> vector<16x128xf32>
    %10 = arith.addf %7, %9 : vector<16x128xf32>
    %c0_5 = arith.constant 0 : index
    %c0_6 = arith.constant 0 : index
    %11 = vector.load %arg7[%c0_5, %c0_6] : memref<16x128xf32, #tpu.memory_space<vmem>>, vector<16x128xf32>
    tpu.vector_store %arg7[%c0_5, %c0_6], %10 {strides = array<i32>} : memref<16x128xf32, #tpu.memory_space<vmem>>, vector<16x128xf32>,
    %c0_i32_7 = arith.constant 0 : i32
    %12 = arith.cmpi eq, %arg1, %c0_i32_7 : i32
    %13 = arith.extui %12 : i1 to i32
    %c0_i32_8 = arith.constant 0 : i32
    %14 = arith.cmpi ne, %13, %c0_i32_8 : i32
    scf.if %14 {
      %c0_9 = arith.constant 0 : index
      %c0_10 = arith.constant 0 : index
      %15 = vector.load %arg7[%c0_9, %c0_10] : memref<16x128xf32, #tpu.memory_space<vmem>>, vector<16x128xf32>
      %16 = arith.truncf %15 : vector<16x128xf32> to vector<16x128xbf16>
      %c0_11 = arith.constant 0 : index
      %c0_12 = arith.constant 0 : index
      %17 = vector.load %arg4[%c0_11, %c0_12] : memref<128x128xbf16, #tpu.memory_space<vmem>>, vector<128x128xbf16>
      %cst_13 = arith.constant dense<0.000000e+00> : vector<16x128xf32>
      %18 = tpu.matmul %16, %17, %cst_13 {dimension_numbers = #tpu.dot_dimension_numbers<[1], [0], [0], [1], [0, 0, 1, 1], [], []>} : vector<16x128xbf16>, vector<128x128xbf16>, vector<16x128xf32> -> vector<16x128xf32>
      %c0_14 = arith.constant 0 : index
      %c0_15 = arith.constant 0 : index
      %19 = vector.load %arg5[%c0_14, %c0_15] : memref<1x128xf32, #tpu.memory_space<vmem>>, vector<1x128xf32>
      %20 = vector.broadcast %19 : vector<1x128xf32> to vector<16x128xf32>
      %21 = arith.addf %18, %20 : vector<16x128xf32>
      %cst_16 = arith.constant 0.000000e+00 : f32
      %22 = vector.broadcast %cst_16 : f32 to vector<16x128xf32>
      %23 = arith.maximumf %21, %22 : vector<16x128xf32>
      %c0_17 = arith.constant 0 : index
      %c0_18 = arith.constant 0 : index
      %24 = vector.load %arg6[%c0_17, %c0_18] : memref<16x128xf32, #tpu.memory_space<vmem>>, vector<16x128xf32>
      tpu.vector_store %arg6[%c0_17, %c0_18], %23 {strides = array<i32>} : memref<16x128xf32, #tpu.memory_space<vmem>>, vector<16x128xf32>,
    } else {
    }
    return
  }
  func.func @transform_0(%arg0: i32, %arg1: i32) -> (i32, i32) {
    %c0_i32 = arith.constant 0 : i32
    return %arg0, %arg1 : i32, i32
  }
  func.func @transform_1(%arg0: i32, %arg1: i32) -> (i32, i32) {
    %c0_i32 = arith.constant 0 : i32
    %c0_i32_0 = arith.constant 0 : i32
    %c0_i32_1 = arith.constant 0 : i32
    return %c0_i32, %c0_i32_0 : i32, i32
  }
  func.func @transform_2(%arg0: i32, %arg1: i32) -> (i32, i32) {
    %c0_i32 = arith.constant 0 : i32
    %c0_i32_0 = arith.constant 0 : i32
    %c0_i32_1 = arith.constant 0 : i32
    return %c0_i32, %c0_i32_0 : i32, i32
  }
  func.func @transform_3(%arg0: i32, %arg1: i32) -> (i32, i32) {
    %c0_i32 = arith.constant 0 : i32
    %c0_i32_0 = arith.constant 0 : i32
    %c0_i32_1 = arith.constant 0 : i32
    return %c0_i32, %c0_i32_0 : i32, i32
  }
  func.func @transform_4(%arg0: i32, %arg1: i32) -> (i32, i32) {
    %c0_i32 = arith.constant 0 : i32
    %c0_i32_0 = arith.constant 0 : i32
    return %arg0, %c0_i32 : i32, i32
  }
}

</mosaic_0001>

<llo_original>
// kernel: tpu_custom_call.1
$region0: #{tpu_custom_call.1}
  #allocation0 [shape = 'u32[]', space=smem, size = 0x4, offset = 0x4, fixed_abs, tag = 'smem constant byte address 0x4 - core index']
  #allocation1 [shape = 'u32[144,128]{1,0:T(1,128)}', space=vmem, size = 0x12000, scoped, tag = 'internal scratch']
  #allocation2 [shape = 'f32[16,128]{1,0:T(8,128)}', space=vmem, size = 0x2000, scoped, tag = 'scratch operand']
  %s0 = inlined_call_operand.hbm [shape: bf16[16,128], index: 0, kind: input, shape index: {}]
  %s1 = inlined_call_operand.hbm [shape: bf16[128,128], index: 1, kind: input, shape index: {}]
  %s2 = inlined_call_operand.hbm [shape: bf16[128,128], index: 2, kind: input, shape index: {}]
  %s3 = inlined_call_operand.vmem [shape: f32[1,128], index: 3, kind: input, shape index: {}]
  %s4 = inlined_call_operand.hbm [shape: f32[16,128], index: 4, kind: output, shape index: {}]
  %s5 = sld [smem:[#allocation0]]
  $region46: #{tpu_custom_call.1} parent=0
    _
  %s7 = ssub.s32 1, %s5
  %s8 = scalar_select 0, %s7, %s5
  $region1: #{tpu_custom_call.1} parent=0
    #allocation3 [shape = 'u8[4096]{0}', space=vmem, size = 0x1000, scoped, tag = 'input window, operand 0, single buffered']
    #allocation4 [shape = 's32[1]{0}', space=sflag, size = 0x4, scoped, tag = 'scoped memory for tpu_custom_call.1']
    #allocation5 [shape = 's32[1]{0}', space=sflag, size = 0x4, scoped, tag = 'scoped memory for tpu_custom_call.1']
    #allocation6 [shape = 'u8[32768]{0}', space=vmem, size = 0x8000, scoped, tag = 'input window, operand 1, single buffered']
    #allocation7 [shape = 's32[1]{0}', space=sflag, size = 0x4, scoped, tag = 'scoped memory for tpu_custom_call.1']
    #allocation8 [shape = 'u8[32768]{0}', space=vmem, size = 0x8000, scoped, tag = 'input window, operand 2, single buffered']
    #allocation9 [shape = 'u8[8192]{0}', space=vmem, size = 0x2000, scoped, tag = 'output window, operand 0, single buffered']
    %9 = vsyncpa [#allocation4], 0
    %10 = vsyncpa [#allocation7], 0
    %11 = vsyncpa [#allocation5], 0
    // Predicated region
    $region2: #{tpu_custom_call.1} parent=1 // pred_check
      _
    $region3: #{tpu_custom_call.1} parent=1 // pred_check_branch
      %13 = sbr.rel (0) target = $region5
    $region4: #{tpu_custom_call.1} parent=1 // pred_region
      %s15 = ssub.s32 128, 128
      %16 = vsyncadd [#allocation4], %s15
      %s17 = sshll.u32 [#allocation3], 4
      %s18 = int_to_ptr.vmem [resolvable:$true] %s17
      %23 = dma.hbm_to_vmem [thread:$0]  %s0, 128, %s18, [#allocation4], 64, 64, 4
    $region5: #{tpu_custom_call.1} parent=1 // pred_fallthru
      _
    // Predicated region
    $region6: #{tpu_custom_call.1} parent=1 // pred_check
      _
    $region7: #{tpu_custom_call.1} parent=1 // pred_check_branch
      %25 = sbr.rel (0) target = $region9
    $region8: #{tpu_custom_call.1} parent=1 // pred_region
      %s27 = ssub.s32 1024, 1024
      %28 = vsyncadd [#allocation7], %s27
      %s29 = sshll.u32 [#allocation6], 4
      %s30 = int_to_ptr.vmem [resolvable:$true] %s29
      %35 = dma.hbm_to_vmem [thread:$0]  %s1, 1024, %s30, [#allocation7], 64, 64, 4
    $region9: #{tpu_custom_call.1} parent=1 // pred_fallthru
      _
    // Predicated region
    $region10: #{tpu_custom_call.1} parent=1 // pred_check
      _
    $region11: #{tpu_custom_call.1} parent=1 // pred_check_branch
      %37 = sbr.rel (0) target = $region13
    $region12: #{tpu_custom_call.1} parent=1 // pred_region
      %s39 = ssub.s32 1024, 1024
      %40 = vsyncadd [#allocation7], %s39
      %s41 = sshll.u32 [#allocation8], 4
      %s42 = int_to_ptr.vmem [resolvable:$true] %s41
      %47 = dma.hbm_to_vmem [thread:$0]  %s2, 1024, %s42, [#allocation7], 64, 64, 4
    $region13: #{tpu_custom_call.1} parent=1 // pred_fallthru
      _
    // Predicated region
    $region14: #{tpu_custom_call.1} parent=1 // pred_check
      _
    $region15: #{tpu_custom_call.1} parent=1 // pred_check_branch
      %49 = sbr.rel (0) target = $region17
    $region16: #{tpu_custom_call.1} parent=1 // pred_region
      _
    $region17: #{tpu_custom_call.1} parent=1 // pred_fallthru
      _
    // Predicated region
    $region18: #{tpu_custom_call.1} parent=1 // pred_check
      _
    $region19: #{tpu_custom_call.1} parent=1 // pred_check_branch
      %51 = sbr.rel (0) target = $region21
    $region20: #{tpu_custom_call.1} parent=1 // pred_region
      %52 = dma.done [#allocation4], 128
    $region21: #{tpu_custom_call.1} parent=1 // pred_fallthru
      _
    // Predicated region
    $region22: #{tpu_custom_call.1} parent=1 // pred_check
      _
    $region23: #{tpu_custom_call.1} parent=1 // pred_check_branch
      %54 = sbr.rel (0) target = $region25
    $region24: #{tpu_custom_call.1} parent=1 // pred_region
      %55 = dma.done [#allocation7], 1024
    $region25: #{tpu_custom_call.1} parent=1 // pred_fallthru
      _
    // Predicated region
    $region26: #{tpu_custom_call.1} parent=1 // pred_check
      _
    $region27: #{tpu_custom_call.1} parent=1 // pred_check_branch
      %57 = sbr.rel (0) target = $region29
    $region28: #{tpu_custom_call.1} parent=1 // pred_region
      %58 = dma.done [#allocation7], 1024
    $region29: #{tpu_custom_call.1} parent=1 // pred_fallthru
      _
    %p60 = scmp.eq.s32.totalorder 0, 0
    // Predicated region
    $region30: #{tpu_custom_call.1} parent=1 // pred_check
      %p61 = pneg %p60
    $region31: #{tpu_custom_call.1} parent=1 // pred_check_branch
      %63 = sbr.rel (%p61) target = $region33
    $region32: #{tpu_custom_call.1} parent=1 // pred_region
      %64 = vst [vmem:[#allocation2] sm:$0xff] 0.0
      %65 = vst [vmem:[#allocation2 + $0x8] sm:$0xff] 0.0
    $region33: #{tpu_custom_call.1} parent=1 // pred_fallthru
      _
    %s66 = smul.u32 0, 128
    %s67 = sshra.s32 %s66, 3
    %s68 = sand.u32 %s66, 7
    %s69 = smul.addr %s67, 4
    %s70 = scalar_lea.vmem [#allocation6], %s69
    %v71 = vld [vmem:[%s70] sm:$0xf]
    %v72 = vld [vmem:[%s70 + $0x4] sm:$0xf]
    %v73 = vld [vmem:[%s70 + $0x8] sm:$0xf]
    %v74 = vld [vmem:[%s70 + $0xc] sm:$0xf]
    %v75 = vld [vmem:[%s70 + $0x10] sm:$0xf]
    %v76 = vld [vmem:[%s70 + $0x14] sm:$0xf]
    %v77 = vld [vmem:[%s70 + $0x18] sm:$0xf]
    %v78 = vld [vmem:[%s70 + $0x1c] sm:$0xf]
    %v79 = vld [vmem:[%s70 + $0x20] sm:$0xf]
    %v80 = vld [vmem:[%s70 + $0x24] sm:$0xf]
    %v81 = vld [vmem:[%s70 + $0x28] sm:$0xf]
    %v82 = vld [vmem:[%s70 + $0x2c] sm:$0xf]
    %v83 = vld [vmem:[%s70 + $0x30] sm:$0xf]
    %v84 = vld [vmem:[%s70 + $0x34] sm:$0xf]
    %v85 = vld [vmem:[%s70 + $0x38] sm:$0xf]
    %v86 = vld [vmem:[%s70 + $0x3c] sm:$0xf]
    %v87 = vld [vmem:[#allocation2] sm:$0xff]
    %v88 = vld [vmem:[#allocation2 + $0x8] sm:$0xff]
    %v89 = vld [vmem:[#allocation3] sm:$0xf]
    %v90 = vld [vmem:[#allocation3 + $0x4] sm:$0xf]
    %v93 = vunpack.c.l.b16 %v89
    %v94 = vunpack.c.l.b16 %v90
    %v95 = vpack.c.b16 %v94, %v93
    %v113 = vunpack.c.l.b16 %v71
    %v114 = vunpack.c.l.b16 %v72
    %v115 = vunpack.c.l.b16 %v73
    %v116 = vunpack.c.l.b16 %v74
    %v117 = vunpack.c.l.b16 %v75
    %v118 = vunpack.c.l.b16 %v76
    %v119 = vunpack.c.l.b16 %v77
    %v120 = vunpack.c.l.b16 %v78
    %v121 = vunpack.c.l.b16 %v79
    %v122 = vunpack.c.l.b16 %v80
    %v123 = vunpack.c.l.b16 %v81
    %v124 = vunpack.c.l.b16 %v82
    %v125 = vunpack.c.l.b16 %v83
    %v126 = vunpack.c.l.b16 %v84
    %v127 = vunpack.c.l.b16 %v85
    %v128 = vunpack.c.l.b16 %v86
    %v129 = vpack.c.b16 %v114, %v113
    %v130 = vpack.c.b16 %v116, %v115
    %v131 = vpack.c.b16 %v118, %v117
    %v132 = vpack.c.b16 %v120, %v119
    %v133 = vpack.c.b16 %v122, %v121
    %v134 = vpack.c.b16 %v124, %v123
    %v135 = vpack.c.b16 %v126, %v125
    %v136 = vpack.c.b16 %v128, %v127
    %145 = vmatprep.subr.bf16.mxu0 0
    %146 = vmatpush1.bf16.msra.mxu0 %v129
    %147 = vmatprep.subr.bf16.mxu0 0
    %148 = vmatpush1.bf16.msra.mxu0 %v130
    %149 = vmatprep.subr.bf16.mxu0 0
    %150 = vmatpush1.bf16.msra.mxu0 %v131
    %151 = vmatprep.subr.bf16.mxu0 0
    %152 = vmatpush1.bf16.msra.mxu0 %v132
    %153 = vmatprep.subr.bf16.mxu0 0
    %154 = vmatpush1.bf16.msra.mxu0 %v133
    %155 = vmatprep.subr.bf16.mxu0 0
    %156 = vmatpush1.bf16.msra.mxu0 %v134
    %157 = vmatprep.subr.bf16.mxu0 0
    %158 = vmatpush1.bf16.msra.mxu0 %v135
    %159 = vmatprep.subr.bf16.mxu0 0
    %160 = vmatpush1.bf16.msra.mxu0 %v136
    %161 = vmatprep.subr.bf16.mxu0 0
    %162 = vmatpush1.bf16.msra.mxu0 0
    %163 = vmatprep.subr.bf16.mxu0 0
    %164 = vmatpush1.bf16.msra.mxu0 0
    %165 = vmatprep.subr.bf16.mxu0 0
    %166 = vmatpush1.bf16.msra.mxu0 0
    %167 = vmatprep.subr.bf16.mxu0 0
    %168 = vmatpush1.bf16.msra.mxu0 0
    %169 = vmatprep.subr.bf16.mxu0 0
    %170 = vmatpush1.bf16.msra.mxu0 0
    %171 = vmatprep.subr.bf16.mxu0 0
    %172 = vmatpush1.bf16.msra.mxu0 0
    %173 = vmatprep.subr.bf16.mxu0 0
    %174 = vmatpush1.bf16.msra.mxu0 0
    %175 = vmatprep.subr.bf16.mxu0 0
    %176 = vmatpush1.bf16.msra.mxu0 0
    %177 = vmatprep.mubr.bf16.mxu0 0
    %178 = vmatmul.mubr.bf16.gmra.mrb[0].mxu0 %v95
    %v179 = vpop.f32.mrb[0].mxu0
    %v180 = vadd.f32 0.0, %v179
    %v181 = vpop.f32.mrb[0].mxu0
    %v182 = vpop.f32.mrb[0].mxu0
    %v183 = vadd.f32 0.0, %v182
    %v184 = vpop.f32.mrb[0].mxu0
    %185 = vdwg.mxu0
    %v186 = vadd.f32 %v87, %v180
    %v187 = vadd.f32 %v88, %v183
    %188 = vst [vmem:[#allocation2] sm:$0xff] %v186
    %189 = vst [vmem:[#allocation2 + $0x8] sm:$0xff] %v187
    // Predicated region
    $region34: #{tpu_custom_call.1} parent=1 // pred_check
      %p190 = pneg %p60
    $region35: #{tpu_custom_call.1} parent=1 // pred_check_branch
      %192 = sbr.rel (%p190) target = $region37
    $region36: #{tpu_custom_call.1} parent=1 // pred_region
      %v193 = vld [vmem:[#allocation2] sm:$0xff]
      %v194 = vld [vmem:[#allocation2 + $0x8] sm:$0xff]
      %v195 = vpack.c.bf16 %v194, %v193
      %v196 = vld [vmem:[#allocation8] sm:$0xf]
      %v197 = vld [vmem:[#allocation8 + $0x4] sm:$0xf]
      %v198 = vld [vmem:[#allocation8 + $0x8] sm:$0xf]
      %v199 = vld [vmem:[#allocation8 + $0xc] sm:$0xf]
      %v200 = vld [vmem:[#allocation8 + $0x10] sm:$0xf]
      %v201 = vld [vmem:[#allocation8 + $0x14] sm:$0xf]
      %v202 = vld [vmem:[#allocation8 + $0x18] sm:$0xf]
      %v203 = vld [vmem:[#allocation8 + $0x1c] sm:$0xf]
      %v204 = vld [vmem:[#allocation8 + $0x20] sm:$0xf]
      %v205 = vld [vmem:[#allocation8 + $0x24] sm:$0xf]
      %v206 = vld [vmem:[#allocation8 + $0x28] sm:$0xf]
      %v207 = vld [vmem:[#allocation8 + $0x2c] sm:$0xf]
      %v208 = vld [vmem:[#allocation8 + $0x30] sm:$0xf]
      %v209 = vld [vmem:[#allocation8 + $0x34] sm:$0xf]
      %v210 = vld [vmem:[#allocation8 + $0x38] sm:$0xf]
      %v211 = vld [vmem:[#allocation8 + $0x3c] sm:$0xf]
      %v212 = vld [vmem:[%s3] sm:$0x1]
      %v214 = vlaneseq
      %v215 = vshrl.u32 %v214, 7
      %v216 = vsub.s32 0, %v215
      %v217 = vrot.slane %v212, %v216
      %v235 = vunpack.c.l.b16 %v196
      %v236 = vunpack.c.l.b16 %v197
      %v237 = vunpack.c.l.b16 %v198
      %v238 = vunpack.c.l.b16 %v199
      %v239 = vunpack.c.l.b16 %v200
      %v240 = vunpack.c.l.b16 %v201
      %v241 = vunpack.c.l.b16 %v202
      %v242 = vunpack.c.l.b16 %v203
      %v243 = vunpack.c.l.b16 %v204
      %v244 = vunpack.c.l.b16 %v205
      %v245 = vunpack.c.l.b16 %v206
      %v246 = vunpack.c.l.b16 %v207
      %v247 = vunpack.c.l.b16 %v208
      %v248 = vunpack.c.l.b16 %v209
      %v249 = vunpack.c.l.b16 %v210
      %v250 = vunpack.c.l.b16 %v211
      %v251 = vpack.c.b16 %v236, %v235
      %v252 = vpack.c.b16 %v238, %v237
      %v253 = vpack.c.b16 %v240, %v239
      %v254 = vpack.c.b16 %v242, %v241
      %v255 = vpack.c.b16 %v244, %v243
      %v256 = vpack.c.b16 %v246, %v245
      %v257 = vpack.c.b16 %v248, %v247
      %v258 = vpack.c.b16 %v250, %v249
      %267 = vmatprep.subr.bf16.mxu0 0
      %268 = vmatpush1.bf16.msra.mxu0 %v251
      %269 = vmatprep.subr.bf16.mxu0 0
      %270 = vmatpush1.bf16.msra.mxu0 %v252
      %271 = vmatprep.subr.bf16.mxu0 0
      %272 = vmatpush1.bf16.msra.mxu0 %v253
      %273 = vmatprep.subr.bf16.mxu0 0
      %274 = vmatpush1.bf16.msra.mxu0 %v254
      %275 = vmatprep.subr.bf16.mxu0 0
      %276 = vmatpush1.bf16.msra.mxu0 %v255
      %277 = vmatprep.subr.bf16.mxu0 0
      %278 = vmatpush1.bf16.msra.mxu0 %v256
      %279 = vmatprep.subr.bf16.mxu0 0
      %280 = vmatpush1.bf16.msra.mxu0 %v257
      %281 = vmatprep.subr.bf16.mxu0 0
      %282 = vmatpush1.bf16.msra.mxu0 %v258
      %283 = vmatprep.subr.bf16.mxu0 0
      %284 = vmatpush1.bf16.msra.mxu0 0
      %285 = vmatprep.subr.bf16.mxu0 0
      %286 = vmatpush1.bf16.msra.mxu0 0
      %287 = vmatprep.subr.bf16.mxu0 0
      %288 = vmatpush1.bf16.msra.mxu0 0
      %289 = vmatprep.subr.bf16.mxu0 0
      %290 = vmatpush1.bf16.msra.mxu0 0
      %291 = vmatprep.subr.bf16.mxu0 0
      %292 = vmatpush1.bf16.msra.mxu0 0
      %293 = vmatprep.subr.bf16.mxu0 0
      %294 = vmatpush1.bf16.msra.mxu0 0
      %295 = vmatprep.subr.bf16.mxu0 0
      %296 = vmatpush1.bf16.msra.mxu0 0
      %297 = vmatprep.subr.bf16.mxu0 0
      %298 = vmatpush1.bf16.msra.mxu0 0
      %299 = vmatprep.mubr.bf16.mxu0 0
      %300 = vmatmul.mubr.bf16.gmra.mrb[0].mxu0 %v195
      %v301 = vpop.f32.mrb[0].mxu0
      %v302 = vadd.f32 %v217, %v301
      %v303 = vpop.f32.mrb[0].mxu0
      %v304 = vpop.f32.mrb[0].mxu0
      %v305 = vadd.f32 %v217, %v304
      %v306 = vpop.f32.mrb[0].mxu0
      %307 = vdwg.mxu0
      %v308 = vmax.f32 %v302, 0.0
      %v309 = vmax.f32 %v305, 0.0
      %310 = vst [vmem:[#allocation9] sm:$0xff] %v308
      %311 = vst [vmem:[#allocation9 + $0x8] sm:$0xff] %v309
    $region37: #{tpu_custom_call.1} parent=1 // pred_fallthru
      _
    // Predicated region
    $region38: #{tpu_custom_call.1} parent=1 // pred_check
      _
    $region39: #{tpu_custom_call.1} parent=1 // pred_check_branch
      %313 = sbr.rel (0) target = $region41
    $region40: #{tpu_custom_call.1} parent=1 // pred_region
      %s315 = ssub.s32 256, 256
      %316 = vsyncadd [#allocation5], %s315
      %s317 = sshll.u32 [#allocation9], 4
      %s318 = int_to_ptr.vmem [resolvable:$true] %s317
      %323 = dma.vmem_to_hbm [thread:$0]  %s318, 256, %s4, [#allocation5], 128, 128, 8
    $region41: #{tpu_custom_call.1} parent=1 // pred_fallthru
      _
    // Predicated region
    $region42: #{tpu_custom_call.1} parent=1 // pred_check
      _
    $region43: #{tpu_custom_call.1} parent=1 // pred_check_branch
      %325 = sbr.rel (0) target = $region45
    $region44: #{tpu_custom_call.1} parent=1 // pred_region
      %326 = dma.done [#allocation5], 256
    $region45: #{tpu_custom_call.1} parent=1 // pred_fallthru
      _
    %327 = vsyncpa [#allocation4], 1
    %328 = vsyncpa [#allocation7], 1
    %329 = vsyncpa [#allocation5], 1

</llo_original>
